<compile_context>
chip_gen: v7x
topology: tpu7x:2x2x1
jax: 0.10.0
libtpu: 0.0.40
codegen_flags: <defaults>
</compile_context>

<pallas_src>
import functools

import jax
import jax.numpy as jnp
from jax.experimental import pallas as pl
from jax.experimental.pallas import tpu as pltpu

_LN_EPS = 1e-5  # PyTorch nn.LayerNorm default


# ----------------------------------------------------------------------------
# Pallas kernel: one row-tile of the fused FFN (matmul -> LN -> relu -> matmul).
# ----------------------------------------------------------------------------
def _ffn_kernel(
    x_ref,       # [tm, d_in]      input rows
    w1_ref,      # [d_in, d_hid]   w_1 weight, pre-transposed
    b1_ref,      # [1, d_hid]
    gamma_ref,   # [1, d_hid]      LayerNorm weight
    beta_ref,    # [1, d_hid]      LayerNorm bias
    w2_ref,      # [d_hid, d_in]   w_2 weight, pre-transposed
    b2_ref,      # [1, d_in]
    o_ref,       # [tm, d_in]      output rows
):
    x = x_ref[...]

    # h = w_1(x)  (1x1 conv == per-row linear), f32 accumulation on the MXU.
    h = jnp.dot(x, w1_ref[...], preferred_element_type=jnp.float32) + b1_ref[...]

    # LayerNorm over d_hid (biased variance, like PyTorch).
    mean = jnp.mean(h, axis=-1, keepdims=True)
    cent = h - mean
    var = jnp.mean(cent * cent, axis=-1, keepdims=True)
    h_ln = cent * jax.lax.rsqrt(var + _LN_EPS) * gamma_ref[...] + beta_ref[...]

    # ReLU, then w_2.
    h_act = jnp.maximum(h_ln, 0.0)
    out = jnp.dot(h_act, w2_ref[...], preferred_element_type=jnp.float32) + b2_ref[...]
    o_ref[...] = out.astype(o_ref.dtype)


def _pick_row_tile(rows, target=512):
    """Largest row tile <= target that divides `rows` and is a multiple of 8."""
    if rows <= target:
        return rows
    for tm in range(target - (target % 8), 7, -8):
        if rows % tm == 0:
            return tm
    return rows


# ----------------------------------------------------------------------------
# Wrapper: flatten [B,T,d_in] -> rows, pre-transpose weights, pallas_call.
# ----------------------------------------------------------------------------
@jax.jit
def positionwise_ffn_forward(x, params):
    B, T, d_in = x.shape
    d_hid = params["w1"].shape[0]
    rows = B * T
    tm = _pick_row_tile(rows)

    x2d = x.reshape(rows, d_in)
    w1t = params["w1"].T                      # [d_in, d_hid]
    w2t = params["w2"].T                      # [d_hid, d_in]
    as2d = lambda v: v.reshape(1, -1)
    const2 = lambda i: (0, 0)

    out2d = pl.pallas_call(
        _ffn_kernel,
        out_shape=jax.ShapeDtypeStruct((rows, d_in), x.dtype),
        grid_spec=pltpu.PrefetchScalarGridSpec(
            num_scalar_prefetch=0,
            grid=(rows // tm,),
            in_specs=[
                pl.BlockSpec((tm, d_in), lambda i: (i, 0)),    # x rows
                pl.BlockSpec((d_in, d_hid), const2),           # w1 (resident)
                pl.BlockSpec((1, d_hid), const2),              # b1
                pl.BlockSpec((1, d_hid), const2),              # gamma
                pl.BlockSpec((1, d_hid), const2),              # beta
                pl.BlockSpec((d_hid, d_in), const2),           # w2 (resident)
                pl.BlockSpec((1, d_in), const2),               # b2
            ],
            out_specs=pl.BlockSpec((tm, d_in), lambda i: (i, 0)),
        ),
        compiler_params=pltpu.CompilerParams(
            dimension_semantics=("parallel",),   # rows are independent
        ),
    )(
        x2d, w1t, as2d(params["b1"]),
        as2d(params["gamma"]), as2d(params["beta"]),
        w2t, as2d(params["b2"]),
    )
    return out2d.reshape(B, T, d_in)


# ----------------------------------------------------------------------------
# Pure-JAX reference (mirrors the PyTorch forward) for validation.
# ----------------------------------------------------------------------------
def reference_forward(x, p):
    h = jnp.einsum("btd,hd->bth", x, p["w1"]) + p["b1"]
    mean = jnp.mean(h, axis=-1, keepdims=True)
    var = jnp.mean((h - mean) ** 2, axis=-1, keepdims=True)
    h = (h - mean) / jnp.sqrt(var + _LN_EPS) * p["gamma"] + p["beta"]
    h = jnp.maximum(h, 0.0)
    return jnp.einsum("bth,dh->btd", h, p["w2"]) + p["b2"]


def init_params(key, d_in, d_hid):
    ks = jax.random.split(key, 4)

    def u(k, shape, fan_in):
        s = 1.0 / jnp.sqrt(jnp.float32(fan_in))
        return jax.random.uniform(k, shape, jnp.float32, -s, s)

    return {
        "w1": u(ks[0], (d_hid, d_in), d_in),   # Conv1d(d_in, d_hid, 1) weight, squeezed
        "b1": u(ks[1], (d_hid,), d_in),
        "gamma": jnp.ones((d_hid,), jnp.float32),
        "beta": jnp.zeros((d_hid,), jnp.float32),
        "w2": u(ks[2], (d_in, d_hid), d_hid),  # Conv1d(d_hid, d_in, 1) weight, squeezed
        "b2": u(ks[3], (d_in,), d_hid),
    }


if __name__ == "__main__":
    # Small shapes consistent with the module's forward: x is [B, T, d_in].
    B, T = 2, 8
    d_in = 32
    d_hid = 128

    key = jax.random.PRNGKey(0)
    k_x, k_p = jax.random.split(key)
    x = jax.random.normal(k_x, (B, T, d_in), jnp.float32)
    params = init_params(k_p, d_in, d_hid)

    out = positionwise_ffn_forward(x, params)
    out = jax.block_until_ready(out)

    ref = reference_forward(x, params)
    assert out.shape == (B, T, d_in)
    assert jnp.allclose(out, ref, atol=1e-4, rtol=1e-4), "mismatch vs reference"

    print("KERNEL_OK")
</pallas_src>

<mosaic_0001>
module attributes {stable_mosaic.version = 11 : i64} {
  func.func @_ffn_kernel(%arg0: i32, %arg1: memref<16x32xf32, #tpu.memory_space<vmem>>, %arg2: memref<32x128xf32, #tpu.memory_space<vmem>>, %arg3: memref<1x128xf32, #tpu.memory_space<vmem>>, %arg4: memref<1x128xf32, #tpu.memory_space<vmem>>, %arg5: memref<1x128xf32, #tpu.memory_space<vmem>>, %arg6: memref<128x32xf32, #tpu.memory_space<vmem>>, %arg7: memref<1x32xf32, #tpu.memory_space<vmem>>, %arg8: memref<16x32xf32, #tpu.memory_space<vmem>>) attributes {dimension_semantics = [#tpu.dimension_semantics<parallel>], iteration_bounds = array<i64: 1>, scalar_prefetch = 0 : i64, scratch_operands = 0 : i64, tpu.core_type = #tpu.core_type<tc>, window_params = [{transform_indices = @transform_0, window_bounds = array<i64: 16, 32>}, {pipeline_mode = #tpu.pipeline_mode<synchronous>, transform_indices = @transform_1, window_bounds = array<i64: 32, 128>}, {pipeline_mode = #tpu.pipeline_mode<synchronous>, transform_indices = @transform_2, window_bounds = array<i64: 1, 128>}, {pipeline_mode = #tpu.pipeline_mode<synchronous>, transform_indices = @transform_3, window_bounds = array<i64: 1, 128>}, {pipeline_mode = #tpu.pipeline_mode<synchronous>, transform_indices = @transform_4, window_bounds = array<i64: 1, 128>}, {pipeline_mode = #tpu.pipeline_mode<synchronous>, transform_indices = @transform_5, window_bounds = array<i64: 128, 32>}, {pipeline_mode = #tpu.pipeline_mode<synchronous>, transform_indices = @transform_6, window_bounds = array<i64: 1, 32>}, {transform_indices = @transform_7, window_bounds = array<i64: 16, 32>}]} {
    %c0 = arith.constant 0 : index
    %c0_0 = arith.constant 0 : index
    %0 = vector.load %arg1[%c0, %c0_0] : memref<16x32xf32, #tpu.memory_space<vmem>>, vector<16x32xf32>
    %c0_1 = arith.constant 0 : index
    %c0_2 = arith.constant 0 : index
    %1 = vector.load %arg2[%c0_1, %c0_2] : memref<32x128xf32, #tpu.memory_space<vmem>>, vector<32x128xf32>
    %cst = arith.constant dense<0.000000e+00> : vector<16x128xf32>
    %2 = tpu.matmul %0, %1, %cst {dimension_numbers = #tpu.dot_dimension_numbers<[1], [0], [0], [1], [0, 0, 1, 1], [], []>} : vector<16x32xf32>, vector<32x128xf32>, vector<16x128xf32> -> vector<16x128xf32>
    %c0_3 = arith.constant 0 : index
    %c0_4 = arith.constant 0 : index
    %3 = vector.load %arg3[%c0_3, %c0_4] : memref<1x128xf32, #tpu.memory_space<vmem>>, vector<1x128xf32>
    %4 = vector.broadcast %3 : vector<1x128xf32> to vector<16x128xf32>
    %5 = arith.addf %2, %4 : vector<16x128xf32>
    %cst_5 = arith.constant dense<0.000000e+00> : vector<16xf32>
    %6 = vector.multi_reduction <add>, %5, %cst_5 [1] : vector<16x128xf32> to vector<16xf32>
    %7 = vector.shape_cast %6 : vector<16xf32> to vector<16x1xf32>
    %cst_6 = arith.constant 1.280000e+02 : f32
    %8 = vector.broadcast %cst_6 : f32 to vector<16x1xf32>
    %9 = arith.divf %7, %8 : vector<16x1xf32>
    %10 = vector.broadcast %9 : vector<16x1xf32> to vector<16x128xf32>
    %11 = arith.subf %5, %10 : vector<16x128xf32>
    %12 = arith.mulf %11, %11 : vector<16x128xf32>
    %cst_7 = arith.constant dense<0.000000e+00> : vector<16xf32>
    %13 = vector.multi_reduction <add>, %12, %cst_7 [1] : vector<16x128xf32> to vector<16xf32>
    %14 = vector.shape_cast %13 : vector<16xf32> to vector<16x1xf32>
    %cst_8 = arith.constant 1.280000e+02 : f32
    %15 = vector.broadcast %cst_8 : f32 to vector<16x1xf32>
    %16 = arith.divf %14, %15 : vector<16x1xf32>
    %cst_9 = arith.constant 9.99999974E-6 : f32
    %17 = vector.broadcast %cst_9 : f32 to vector<16x1xf32>
    %18 = arith.addf %16, %17 : vector<16x1xf32>
    %19 = math.rsqrt %18 : vector<16x1xf32>
    %20 = vector.broadcast %19 : vector<16x1xf32> to vector<16x128xf32>
    %21 = arith.mulf %11, %20 : vector<16x128xf32>
    %c0_10 = arith.constant 0 : index
    %c0_11 = arith.constant 0 : index
    %22 = vector.load %arg4[%c0_10, %c0_11] : memref<1x128xf32, #tpu.memory_space<vmem>>, vector<1x128xf32>
    %23 = vector.broadcast %22 : vector<1x128xf32> to vector<16x128xf32>
    %24 = arith.mulf %21, %23 : vector<16x128xf32>
    %c0_12 = arith.constant 0 : index
    %c0_13 = arith.constant 0 : index
    %25 = vector.load %arg5[%c0_12, %c0_13] : memref<1x128xf32, #tpu.memory_space<vmem>>, vector<1x128xf32>
    %26 = vector.broadcast %25 : vector<1x128xf32> to vector<16x128xf32>
    %27 = arith.addf %24, %26 : vector<16x128xf32>
    %cst_14 = arith.constant 0.000000e+00 : f32
    %28 = vector.broadcast %cst_14 : f32 to vector<16x128xf32>
    %29 = arith.maximumf %27, %28 : vector<16x128xf32>
    %c0_15 = arith.constant 0 : index
    %c0_16 = arith.constant 0 : index
    %30 = vector.load %arg6[%c0_15, %c0_16] : memref<128x32xf32, #tpu.memory_space<vmem>>, vector<128x32xf32>
    %cst_17 = arith.constant dense<0.000000e+00> : vector<16x32xf32>
    %31 = tpu.matmul %29, %30, %cst_17 {dimension_numbers = #tpu.dot_dimension_numbers<[1], [0], [0], [1], [0, 0, 1, 1], [], []>} : vector<16x128xf32>, vector<128x32xf32>, vector<16x32xf32> -> vector<16x32xf32>
    %c0_18 = arith.constant 0 : index
    %c0_19 = arith.constant 0 : index
    %32 = vector.load %arg7[%c0_18, %c0_19] : memref<1x32xf32, #tpu.memory_space<vmem>>, vector<1x32xf32>
    %33 = vector.broadcast %32 : vector<1x32xf32> to vector<16x32xf32>
    %34 = arith.addf %31, %33 : vector<16x32xf32>
    %c0_20 = arith.constant 0 : index
    %c0_21 = arith.constant 0 : index
    %35 = vector.load %arg8[%c0_20, %c0_21] : memref<16x32xf32, #tpu.memory_space<vmem>>, vector<16x32xf32>
    tpu.vector_store %arg8[%c0_20, %c0_21], %34 {strides = array<i32>} : memref<16x32xf32, #tpu.memory_space<vmem>>, vector<16x32xf32>,
    return
  }
  func.func @transform_0(%arg0: i32) -> (i32, i32) {
    %c0_i32 = arith.constant 0 : i32
    %c0_i32_0 = arith.constant 0 : i32
    return %arg0, %c0_i32 : i32, i32
  }
  func.func @transform_1(%arg0: i32) -> (i32, i32) {
    %c0_i32 = arith.constant 0 : i32
    %c0_i32_0 = arith.constant 0 : i32
    %c0_i32_1 = arith.constant 0 : i32
    return %c0_i32, %c0_i32_0 : i32, i32
  }
  func.func @transform_2(%arg0: i32) -> (i32, i32) {
    %c0_i32 = arith.constant 0 : i32
    %c0_i32_0 = arith.constant 0 : i32
    %c0_i32_1 = arith.constant 0 : i32
    return %c0_i32, %c0_i32_0 : i32, i32
  }
  func.func @transform_3(%arg0: i32) -> (i32, i32) {
    %c0_i32 = arith.constant 0 : i32
    %c0_i32_0 = arith.constant 0 : i32
    %c0_i32_1 = arith.constant 0 : i32
    return %c0_i32, %c0_i32_0 : i32, i32
  }
  func.func @transform_4(%arg0: i32) -> (i32, i32) {
    %c0_i32 = arith.constant 0 : i32
    %c0_i32_0 = arith.constant 0 : i32
    %c0_i32_1 = arith.constant 0 : i32
    return %c0_i32, %c0_i32_0 : i32, i32
  }
  func.func @transform_5(%arg0: i32) -> (i32, i32) {
    %c0_i32 = arith.constant 0 : i32
    %c0_i32_0 = arith.constant 0 : i32
    %c0_i32_1 = arith.constant 0 : i32
    return %c0_i32, %c0_i32_0 : i32, i32
  }
  func.func @transform_6(%arg0: i32) -> (i32, i32) {
    %c0_i32 = arith.constant 0 : i32
    %c0_i32_0 = arith.constant 0 : i32
    %c0_i32_1 = arith.constant 0 : i32
    return %c0_i32, %c0_i32_0 : i32, i32
  }
  func.func @transform_7(%arg0: i32) -> (i32, i32) {
    %c0_i32 = arith.constant 0 : i32
    %c0_i32_0 = arith.constant 0 : i32
    return %arg0, %c0_i32 : i32, i32
  }
}

</mosaic_0001>

<llo_original>
// kernel: positionwise_ffn_forward.1
$region0: #{positionwise_ffn_forward.1}
  #allocation0 [shape = 'u32[]', space=smem, size = 0x4, offset = 0x4, fixed_abs, tag = 'smem constant byte address 0x4 - core index']
  #allocation1 [shape = 'u32[144,128]{1,0:T(1,128)}', space=vmem, size = 0x12000, scoped, tag = 'internal scratch']
  %s0 = inlined_call_operand.vmem [shape: f32[16,32], index: 0, kind: input, shape index: {}]
  %s1 = inlined_call_operand.vmem [shape: f32[32,128], index: 1, kind: input, shape index: {}]
  %s2 = inlined_call_operand.vmem [shape: f32[1,128], index: 2, kind: input, shape index: {}]
  %s3 = inlined_call_operand.vmem [shape: f32[1,128], index: 3, kind: input, shape index: {}]
  %s4 = inlined_call_operand.vmem [shape: f32[1,128], index: 4, kind: input, shape index: {}]
  %s5 = inlined_call_operand.vmem [shape: f32[128,32], index: 5, kind: input, shape index: {}]
  %s6 = inlined_call_operand.vmem [shape: f32[1,32], index: 6, kind: input, shape index: {}]
  %s7 = inlined_call_operand.hbm [shape: f32[16,32], index: 7, kind: output, shape index: {}]
  %s8 = sld [smem:[#allocation0]]
  $region38: #{positionwise_ffn_forward.1} parent=0
    _
  %s10 = ssub.s32 1, %s8
  %s11 = scalar_select 0, %s10, %s8
  $region1: #{positionwise_ffn_forward.1} parent=0
    #allocation2 [shape = 'u8[8192]{0}', space=vmem, size = 0x2000, scoped, tag = 'output window, operand 0, single buffered']
    #allocation3 [shape = 's32[1]{0}', space=sflag, size = 0x4, scoped, tag = 'scoped memory for positionwise_ffn_forward.1']
    %12 = vsyncpa [#allocation3], 0
    // Predicated region
    $region2: #{positionwise_ffn_forward.1} parent=1 // pred_check
      _
    $region3: #{positionwise_ffn_forward.1} parent=1 // pred_check_branch
      %14 = sbr.rel (0) target = $region5
    $region4: #{positionwise_ffn_forward.1} parent=1 // pred_region
      _
    $region5: #{positionwise_ffn_forward.1} parent=1 // pred_fallthru
      _
    // Predicated region
    $region6: #{positionwise_ffn_forward.1} parent=1 // pred_check
      _
    $region7: #{positionwise_ffn_forward.1} parent=1 // pred_check_branch
      %16 = sbr.rel (0) target = $region9
    $region8: #{positionwise_ffn_forward.1} parent=1 // pred_region
      _
    $region9: #{positionwise_ffn_forward.1} parent=1 // pred_fallthru
      _
    // Predicated region
    $region10: #{positionwise_ffn_forward.1} parent=1 // pred_check
      _
    $region11: #{positionwise_ffn_forward.1} parent=1 // pred_check_branch
      %18 = sbr.rel (0) target = $region13
    $region12: #{positionwise_ffn_forward.1} parent=1 // pred_region
      _
    $region13: #{positionwise_ffn_forward.1} parent=1 // pred_fallthru
      _
    // Predicated region
    $region14: #{positionwise_ffn_forward.1} parent=1 // pred_check
      _
    $region15: #{positionwise_ffn_forward.1} parent=1 // pred_check_branch
      %20 = sbr.rel (0) target = $region17
    $region16: #{positionwise_ffn_forward.1} parent=1 // pred_region
      _
    $region17: #{positionwise_ffn_forward.1} parent=1 // pred_fallthru
      _
    // Predicated region
    $region18: #{positionwise_ffn_forward.1} parent=1 // pred_check
      _
    $region19: #{positionwise_ffn_forward.1} parent=1 // pred_check_branch
      %22 = sbr.rel (0) target = $region21
    $region20: #{positionwise_ffn_forward.1} parent=1 // pred_region
      _
    $region21: #{positionwise_ffn_forward.1} parent=1 // pred_fallthru
      _
    // Predicated region
    $region22: #{positionwise_ffn_forward.1} parent=1 // pred_check
      _
    $region23: #{positionwise_ffn_forward.1} parent=1 // pred_check_branch
      %24 = sbr.rel (0) target = $region25
    $region24: #{positionwise_ffn_forward.1} parent=1 // pred_region
      _
    $region25: #{positionwise_ffn_forward.1} parent=1 // pred_fallthru
      _
    // Predicated region
    $region26: #{positionwise_ffn_forward.1} parent=1 // pred_check
      _
    $region27: #{positionwise_ffn_forward.1} parent=1 // pred_check_branch
      %26 = sbr.rel (0) target = $region29
    $region28: #{positionwise_ffn_forward.1} parent=1 // pred_region
      _
    $region29: #{positionwise_ffn_forward.1} parent=1 // pred_fallthru
      _
    %v27 = vld [vmem:[%s0] sm:$0xff]
    %v28 = vld [vmem:[%s0 + $0x8] sm:$0xff]
    %v29 = vld [vmem:[%s1] sm:$0xff]
    %v30 = vld [vmem:[%s1 + $0x8] sm:$0xff]
    %v31 = vld [vmem:[%s1 + $0x10] sm:$0xff]
    %v32 = vld [vmem:[%s1 + $0x18] sm:$0xff]
    %v33 = vld [vmem:[%s2] sm:$0x1]
    %v35 = vlaneseq
    %v36 = vshrl.u32 %v35, 7
    %v37 = vsub.s32 0, %v36
    %v38 = vrot.slane %v33, %v37
    %vm40 = vcmask 261120
    %v42 = vsel %vm40, %v27, 0
    %v45 = vsel %vm40, %v28, 0
    %47 = vmatprep.subr.mxu0 0.0
    %48 = vmatpush1.msra.mxu0 %v29
    %49 = vmatprep.subr.mxu0 0.0
    %50 = vmatpush1.msra.mxu0 %v30
    %51 = vmatprep.subr.mxu0 0.0
    %52 = vmatpush1.msra.mxu0 %v31
    %53 = vmatprep.subr.mxu0 0.0
    %54 = vmatpush1.msra.mxu0 %v32
    %55 = vmatprep.subr.mxu0 0.0
    %56 = vmatpush1.msra.mxu0 0.0
    %57 = vmatprep.subr.mxu0 0.0
    %58 = vmatpush1.msra.mxu0 0.0
    %59 = vmatprep.subr.mxu0 0.0
    %60 = vmatpush1.msra.mxu0 0.0
    %61 = vmatprep.subr.mxu0 0.0
    %62 = vmatpush1.msra.mxu0 0.0
    %63 = vmatprep.subr.mxu0 0.0
    %64 = vmatpush1.msra.mxu0 0.0
    %65 = vmatprep.subr.mxu0 0.0
    %66 = vmatpush1.msra.mxu0 0.0
    %67 = vmatprep.subr.mxu0 0.0
    %68 = vmatpush1.msra.mxu0 0.0
    %69 = vmatprep.subr.mxu0 0.0
    %70 = vmatpush1.msra.mxu0 0.0
    %71 = vmatprep.subr.mxu0 0.0
    %72 = vmatpush1.msra.mxu0 0.0
    %73 = vmatprep.subr.mxu0 0.0
    %74 = vmatpush1.msra.mxu0 0.0
    %75 = vmatprep.subr.mxu0 0.0
    %76 = vmatpush1.msra.mxu0 0.0
    %77 = vmatprep.subr.mxu0 0.0
    %78 = vmatpush1.msra.mxu0 0.0
    %79 = vmatprep.subr.mxu0 0.0
    %80 = vmatpush1.msra.mxu0 0.0
    %81 = vmatprep.subr.mxu0 0.0
    %82 = vmatpush1.msra.mxu0 0.0
    %83 = vmatprep.subr.mxu0 0.0
    %84 = vmatpush1.msra.mxu0 0.0
    %85 = vmatprep.subr.mxu0 0.0
    %86 = vmatpush1.msra.mxu0 0.0
    %87 = vmatprep.subr.mxu0 0.0
    %88 = vmatpush1.msra.mxu0 0.0
    %89 = vmatprep.subr.mxu0 0.0
    %90 = vmatpush1.msra.mxu0 0.0
    %91 = vmatprep.subr.mxu0 0.0
    %92 = vmatpush1.msra.mxu0 0.0
    %93 = vmatprep.subr.mxu0 0.0
    %94 = vmatpush1.msra.mxu0 0.0
    %95 = vmatprep.subr.mxu0 0.0
    %96 = vmatpush1.msra.mxu0 0.0
    %97 = vmatprep.subr.mxu0 0.0
    %98 = vmatpush1.msra.mxu0 0.0
    %99 = vmatprep.subr.mxu0 0.0
    %100 = vmatpush1.msra.mxu0 0.0
    %101 = vmatprep.subr.mxu0 0.0
    %102 = vmatpush1.msra.mxu0 0.0
    %103 = vmatprep.subr.mxu0 0.0
    %104 = vmatpush1.msra.mxu0 0.0
    %105 = vmatprep.subr.mxu0 0.0
    %106 = vmatpush1.msra.mxu0 0.0
    %107 = vmatprep.subr.mxu0 0.0
    %108 = vmatpush1.msra.mxu0 0.0
    %109 = vmatprep.subr.mxu0 0.0
    %110 = vmatpush1.msra.mxu0 0.0
    %111 = vmatprep.mubr.f32.mxu0 0.0
    %112 = vmatmul.mubr.f32.gmra.mrb[0].mxu0 %v42
    %v113 = vpop.f32.mrb[0].mxu0
    %v114 = vadd.f32 %v38, %v113
    %v115 = vpop.f32.mrb[0].mxu0
    %116 = vmatprep.mubr.f32.mxu0 0.0
    %117 = vmatmul.mubr.f32.gmra.mrb[0].mxu0 %v45
    %v118 = vpop.f32.mrb[0].mxu0
    %v119 = vadd.f32 %v38, %v118
    %v120 = vpop.f32.mrb[0].mxu0
    %121 = vdwg.mxu0
    %122 = vadd.xlane.f32.xlu0 %v114
    %v123 = vpop.xlane.xlu0 %122
    %124 = vadd.xlane.f32.xlu0 %v119
    %v125 = vpop.xlane.xlu0 %124
    %v126 = vrcp.pop 128.0
    %v127 = vmul.f32 %v123, %v126
    %v128 = vmul.f32 %v125, %v126
    %v129 = vsub.f32 %v114, %v127
    %v130 = vsub.f32 %v119, %v128
    %v131 = vmul.f32 %v129, %v129
    %v132 = vmul.f32 %v130, %v130
    %133 = vadd.xlane.f32.xlu0 %v131
    %v134 = vpop.xlane.xlu0 %133
    %135 = vadd.xlane.f32.xlu0 %v132
    %v136 = vpop.xlane.xlu0 %135
    %v137 = vmul.f32 %v134, %v126
    %v138 = vmul.f32 %v136, %v126
    %v139 = vadd.f32 %v137, 1e-05
    %v140 = vadd.f32 %v138, 1e-05
    %v141 = vrsqrt.pop %v139
    %v142 = vrsqrt.pop %v140
    %v143 = vmul.f32 %v129, %v141
    %v144 = vmul.f32 %v130, %v142
    %v145 = vld [vmem:[%s3] sm:$0x1]
    %v147 = vlaneseq
    %v148 = vshrl.u32 %v147, 7
    %v149 = vsub.s32 0, %v148
    %v150 = vrot.slane %v145, %v149
    %v152 = vmul.f32 %v143, %v150
    %v153 = vmul.f32 %v144, %v150
    %v154 = vld [vmem:[%s4] sm:$0x1]
    %v156 = vlaneseq
    %v157 = vshrl.u32 %v156, 7
    %v158 = vsub.s32 0, %v157
    %v159 = vrot.slane %v154, %v158
    %v161 = vadd.f32 %v152, %v159
    %v162 = vadd.f32 %v153, %v159
    %v163 = vmax.f32 %v161, 0.0
    %v164 = vmax.f32 %v162, 0.0
    %v165 = vld [vmem:[%s5] sm:$0xff]
    %v166 = vld [vmem:[%s5 + $0x8] sm:$0xff]
    %v167 = vld [vmem:[%s5 + $0x10] sm:$0xff]
    %v168 = vld [vmem:[%s5 + $0x18] sm:$0xff]
    %v169 = vld [vmem:[%s5 + $0x20] sm:$0xff]
    %v170 = vld [vmem:[%s5 + $0x28] sm:$0xff]
    %v171 = vld [vmem:[%s5 + $0x30] sm:$0xff]
    %v172 = vld [vmem:[%s5 + $0x38] sm:$0xff]
    %v173 = vld [vmem:[%s5 + $0x40] sm:$0xff]
    %v174 = vld [vmem:[%s5 + $0x48] sm:$0xff]
    %v175 = vld [vmem:[%s5 + $0x50] sm:$0xff]
    %v176 = vld [vmem:[%s5 + $0x58] sm:$0xff]
    %v177 = vld [vmem:[%s5 + $0x60] sm:$0xff]
    %v178 = vld [vmem:[%s5 + $0x68] sm:$0xff]
    %v179 = vld [vmem:[%s5 + $0x70] sm:$0xff]
    %v180 = vld [vmem:[%s5 + $0x78] sm:$0xff]
    %v181 = vld [vmem:[%s6] sm:$0x1]
    %v183 = vlaneseq
    %v184 = vshrl.u32 %v183, 7
    %v185 = vsub.s32 0, %v184
    %v186 = vrot.slane %v181, %v185
    %188 = vmatprep.subr.mxu0 0.0
    %189 = vmatpush1.msra.mxu0 %v165
    %190 = vmatprep.subr.mxu0 0.0
    %191 = vmatpush1.msra.mxu0 %v166
    %192 = vmatprep.subr.mxu0 0.0
    %193 = vmatpush1.msra.mxu0 %v167
    %194 = vmatprep.subr.mxu0 0.0
    %195 = vmatpush1.msra.mxu0 %v168
    %196 = vmatprep.subr.mxu0 0.0
    %197 = vmatpush1.msra.mxu0 %v169
    %198 = vmatprep.subr.mxu0 0.0
    %199 = vmatpush1.msra.mxu0 %v170
    %200 = vmatprep.subr.mxu0 0.0
    %201 = vmatpush1.msra.mxu0 %v171
    %202 = vmatprep.subr.mxu0 0.0
    %203 = vmatpush1.msra.mxu0 %v172
    %204 = vmatprep.subr.mxu0 0.0
    %205 = vmatpush1.msra.mxu0 %v173
    %206 = vmatprep.subr.mxu0 0.0
    %207 = vmatpush1.msra.mxu0 %v174
    %208 = vmatprep.subr.mxu0 0.0
    %209 = vmatpush1.msra.mxu0 %v175
    %210 = vmatprep.subr.mxu0 0.0
    %211 = vmatpush1.msra.mxu0 %v176
    %212 = vmatprep.subr.mxu0 0.0
    %213 = vmatpush1.msra.mxu0 %v177
    %214 = vmatprep.subr.mxu0 0.0
    %215 = vmatpush1.msra.mxu0 %v178
    %216 = vmatprep.subr.mxu0 0.0
    %217 = vmatpush1.msra.mxu0 %v179
    %218 = vmatprep.subr.mxu0 0.0
    %219 = vmatpush1.msra.mxu0 %v180
    %220 = vmatprep.subr.mxu0 0.0
    %221 = vmatpush1.msra.mxu0 0.0
    %222 = vmatprep.subr.mxu0 0.0
    %223 = vmatpush1.msra.mxu0 0.0
    %224 = vmatprep.subr.mxu0 0.0
    %225 = vmatpush1.msra.mxu0 0.0
    %226 = vmatprep.subr.mxu0 0.0
    %227 = vmatpush1.msra.mxu0 0.0
    %228 = vmatprep.subr.mxu0 0.0
    %229 = vmatpush1.msra.mxu0 0.0
    %230 = vmatprep.subr.mxu0 0.0
    %231 = vmatpush1.msra.mxu0 0.0
    %232 = vmatprep.subr.mxu0 0.0
    %233 = vmatpush1.msra.mxu0 0.0
    %234 = vmatprep.subr.mxu0 0.0
    %235 = vmatpush1.msra.mxu0 0.0
    %236 = vmatprep.subr.mxu0 0.0
    %237 = vmatpush1.msra.mxu0 0.0
    %238 = vmatprep.subr.mxu0 0.0
    %239 = vmatpush1.msra.mxu0 0.0
    %240 = vmatprep.subr.mxu0 0.0
    %241 = vmatpush1.msra.mxu0 0.0
    %242 = vmatprep.subr.mxu0 0.0
    %243 = vmatpush1.msra.mxu0 0.0
    %244 = vmatprep.subr.mxu0 0.0
    %245 = vmatpush1.msra.mxu0 0.0
    %246 = vmatprep.subr.mxu0 0.0
    %247 = vmatpush1.msra.mxu0 0.0
    %248 = vmatprep.subr.mxu0 0.0
    %249 = vmatpush1.msra.mxu0 0.0
    %250 = vmatprep.subr.mxu0 0.0
    %251 = vmatpush1.msra.mxu0 0.0
    %252 = vmatprep.mubr.f32.mxu0 0.0
    %253 = vmatmul.mubr.f32.gmra.mrb[0].mxu0 %v163
    %v254 = vpop.f32.mrb[0].mxu0
    %v255 = vadd.f32 %v186, %v254
    %v256 = vpop.f32.mrb[0].mxu0
    %257 = vmatprep.mubr.f32.mxu0 0.0
    %258 = vmatmul.mubr.f32.gmra.mrb[0].mxu0 %v164
    %v259 = vpop.f32.mrb[0].mxu0
    %v260 = vadd.f32 %v186, %v259
    %v261 = vpop.f32.mrb[0].mxu0
    %262 = vdwg.mxu0
    %263 = vst.msk [vmem:[#allocation2] sm:$0xff] %vm40, %v255
    %264 = vst.msk [vmem:[#allocation2 + $0x8] sm:$0xff] %vm40, %v260
    // Predicated region
    $region30: #{positionwise_ffn_forward.1} parent=1 // pred_check
      _
    $region31: #{positionwise_ffn_forward.1} parent=1 // pred_check_branch
      %266 = sbr.rel (0) target = $region33
    $region32: #{positionwise_ffn_forward.1} parent=1 // pred_region
      %s268 = ssub.s32 256, 256
      %269 = vsyncadd [#allocation3], %s268
      %s270 = sshll.u32 [#allocation2], 4
      %s271 = int_to_ptr.vmem [resolvable:$true] %s270
      %276 = dma.vmem_to_hbm [thread:$0]  %s271, 256, %s7, [#allocation3], 128, 128, 8
    $region33: #{positionwise_ffn_forward.1} parent=1 // pred_fallthru
      _
    // Predicated region
    $region34: #{positionwise_ffn_forward.1} parent=1 // pred_check
      _
    $region35: #{positionwise_ffn_forward.1} parent=1 // pred_check_branch
      %278 = sbr.rel (0) target = $region37
    $region36: #{positionwise_ffn_forward.1} parent=1 // pred_region
      %279 = dma.done [#allocation3], 256
    $region37: #{positionwise_ffn_forward.1} parent=1 // pred_fallthru
      _
    %280 = vsyncpa [#allocation3], 1

</llo_original>
